<compile_context>
chip_gen: v5e
topology: v5e:2x2
jax: 0.10.0
libtpu: 0.0.40
codegen_flags: <defaults>
</compile_context>

<pallas_src>
import functools

import jax
import jax.numpy as jnp
import numpy as np
from jax import lax
from jax.experimental import pallas as pl
from jax.experimental.pallas import tpu as pltpu


# ----------------------------------------------------------------------------
# Fused Pallas kernel: depthwise conv + BN affine + 1x1 conv
# ----------------------------------------------------------------------------
def _dw_bn_pw_kernel(xph_ref, wdw_ref, scale_ref, shift_ref, wpw_ref, bias_ref,
                     o_ref, *, ksize, stride, th_o):
    """One (batch, output-row-tile) grid point.

    xph_ref  : (1, s, s, Hq, Wq, Cin)  phase-split padded input (full image of
               the current batch element; resident across row tiles).
    wdw_ref  : (k*k, Cin)              depthwise taps.
    scale_ref: (1, Cin)                folded BN scale  (gamma / sqrt(var+eps)).
    shift_ref: (1, Cin)                folded BN shift  (beta + (b_dw-mean)*scale).
    wpw_ref  : (Cin, Cout)             1x1 conv weight.
    bias_ref : (1, Cout)               1x1 conv bias.
    o_ref    : (1, th_o, Wo, Cout)     output row tile.
    """
    r = pl.program_id(1)
    row0 = r * th_o                      # output-row offset of this tile
    _, _, Wo, Cout = o_ref.shape
    Cin = xph_ref.shape[-1]

    # Hoist per-channel parameters out of the unrolled tap loop.
    w_taps = wdw_ref[...].astype(jnp.float32)        # (k*k, Cin)
    scale = scale_ref[...].astype(jnp.float32)       # (1, Cin)
    shift = shift_ref[...].astype(jnp.float32)       # (1, Cin)

    # Depthwise conv: k*k contiguous shifted windows read from the phase-split
    # image, multiply-accumulated on the VPU in fp32.
    acc = jnp.zeros((th_o, Wo, Cin), jnp.float32)
    for dy in range(ksize):
        py, oy = dy % stride, dy // stride
        for dx in range(ksize):
            px, ox = dx % stride, dx // stride
            win = xph_ref[0, py, px, pl.ds(row0 + oy, th_o), pl.ds(ox, Wo), :]
            acc = acc + win.astype(jnp.float32) * w_taps[dy * ksize + dx]

    # Eval-mode BatchNorm (+ depthwise bias), folded into a per-channel affine.
    y = acc * scale + shift                          # (th_o, Wo, Cin)
    y2 = y.reshape(th_o * Wo, Cin)

    # 1x1 conv on the MXU: bf16 operands, fp32 accumulation.
    out = jnp.dot(y2.astype(jnp.bfloat16), wpw_ref[...].astype(jnp.bfloat16),
                  preferred_element_type=jnp.float32)
    out = out + bias_ref[...].astype(jnp.float32)
    o_ref[...] = out.reshape(1, th_o, Wo, Cout).astype(o_ref.dtype)


# ----------------------------------------------------------------------------
# Wrapper: NCHW in / NCHW out, matches the PyTorch module (eval mode)
# ----------------------------------------------------------------------------
def depthwise_conv2d_forward(x_nchw, params, *, kernel_size, padding, stride,
                             eps=1e-5, block_rows=8):
    B, Cin, H, W = x_nchw.shape
    k, p, s = kernel_size, padding, stride
    Cout = params['w_pw'].shape[0]
    Ho = (H + 2 * p - k) // s + 1
    Wo = (W + 2 * p - k) // s + 1

    # NCHW -> NHWC so channels sit on the TPU lane axis.
    x = jnp.transpose(x_nchw, (0, 2, 3, 1)).astype(jnp.float32)

    # Fold depthwise bias + eval-mode BatchNorm into a per-channel affine.
    scale = params['gamma'] / jnp.sqrt(params['var'] + eps)
    shift = params['beta'] + (params['b_dw'] - params['mean']) * scale

    # Weight layout conversions (PyTorch -> kernel).
    w_dw = params['w_dw'].reshape(Cin, k, k).transpose(1, 2, 0).reshape(k * k, Cin)
    w_pw = params['w_pw'].reshape(Cout, Cin).T                    # (Cin, Cout)
    b_pw = params['b_pw'].reshape(1, Cout)

    # Zero-pad spatially (conv padding + a few extra zero rows/cols on the
    # bottom/right so dims are multiples of the stride; the extra zeros are
    # never read by any tap window).
    Hq = max((k - 1) // s + Ho, -(-(H + 2 * p) // s))
    Wq = max((k - 1) // s + Wo, -(-(W + 2 * p) // s))
    xp = jnp.pad(x, ((0, 0),
                     (p, Hq * s - H - p),
                     (p, Wq * s - W - p),
                     (0, 0)))

    # Space-to-depth phase split (single pass over the input; identity for s=1):
    # xph[b, py, px, i, j, c] == xp[b, i*s + py, j*s + px, c]
    xph = xp.reshape(B, Hq, s, Wq, s, Cin).transpose(0, 2, 4, 1, 3, 5)

    # Output row-tile size: largest divisor of Ho that is <= block_rows.
    th = max(1, min(block_rows, Ho))
    while Ho % th:
        th -= 1

    out = pl.pallas_call(
        functools.partial(_dw_bn_pw_kernel, ksize=k, stride=s, th_o=th),
        grid=(B, Ho // th),
        in_specs=[
            pl.BlockSpec((1, s, s, Hq, Wq, Cin), lambda b, r: (b, 0, 0, 0, 0, 0)),
            pl.BlockSpec((k * k, Cin), lambda b, r: (0, 0)),
            pl.BlockSpec((1, Cin), lambda b, r: (0, 0)),
            pl.BlockSpec((1, Cin), lambda b, r: (0, 0)),
            pl.BlockSpec((Cin, Cout), lambda b, r: (0, 0)),
            pl.BlockSpec((1, Cout), lambda b, r: (0, 0)),
        ],
        out_specs=pl.BlockSpec((1, th, Wo, Cout), lambda b, r: (b, r, 0, 0)),
        out_shape=jax.ShapeDtypeStruct((B, Ho, Wo, Cout), jnp.float32),
        compiler_params=pltpu.CompilerParams(
            dimension_semantics=("parallel", "parallel")),
    )(xph, w_dw, scale.reshape(1, Cin), shift.reshape(1, Cin), w_pw, b_pw)

    return jnp.transpose(out, (0, 3, 1, 2))                       # NHWC -> NCHW


# ----------------------------------------------------------------------------
# Pure-JAX reference (fp32) for validation
# ----------------------------------------------------------------------------
def _reference(x_nchw, params, *, kernel_size, padding, stride, eps=1e-5):
    k, p, s = kernel_size, padding, stride
    Cin = x_nchw.shape[1]
    y = lax.conv_general_dilated(
        x_nchw, params['w_dw'], window_strides=(s, s),
        padding=[(p, p), (p, p)],
        dimension_numbers=('NCHW', 'OIHW', 'NCHW'),
        feature_group_count=Cin)
    y = y + params['b_dw'][None, :, None, None]
    inv = 1.0 / jnp.sqrt(params['var'] + eps)
    y = (y - params['mean'][None, :, None, None]) * (params['gamma'] * inv)[None, :, None, None]
    y = y + params['beta'][None, :, None, None]
    w_pw = params['w_pw'].reshape(params['w_pw'].shape[0], Cin)
    y = jnp.einsum('bchw,oc->bohw', y, w_pw) + params['b_pw'][None, :, None, None]
    return y


# ----------------------------------------------------------------------------
# Deterministic parameters (PyTorch layouts; BN in eval mode)
# ----------------------------------------------------------------------------
def init_params(key, dim_in, dim_out, kernel_size):
    ks = jax.random.split(key, 8)
    nrm = lambda kk, shape, sc=0.1: sc * jax.random.normal(kk, shape, jnp.float32)
    return dict(
        w_dw=nrm(ks[0], (dim_in, 1, kernel_size, kernel_size)),   # Conv2d(groups=dim_in)
        b_dw=nrm(ks[1], (dim_in,)),
        gamma=1.0 + nrm(ks[2], (dim_in,)),                        # BatchNorm2d (eval)
        beta=nrm(ks[3], (dim_in,)),
        mean=nrm(ks[4], (dim_in,)),
        var=1.0 + jnp.abs(nrm(ks[5], (dim_in,))),
        w_pw=nrm(ks[6], (dim_out, dim_in, 1, 1)),                 # Conv2d 1x1
        b_pw=nrm(ks[7], (dim_out,)),
    )


if __name__ == "__main__":
    B, Cin, Cout, H, W = 2, 64, 128, 16, 16
    kernel_size, padding = 3, 1

    key = jax.random.PRNGKey(0)
    kx, kp = jax.random.split(key)
    x = jax.random.normal(kx, (B, Cin, H, W), jnp.float32)        # NCHW like PyTorch
    params = init_params(kp, Cin, Cout, kernel_size)

    for stride in (2, 1):                                         # exercise both paths
        fwd = jax.jit(functools.partial(
            depthwise_conv2d_forward, kernel_size=kernel_size,
            padding=padding, stride=stride, block_rows=4))
        out = fwd(x, params)
        jax.block_until_ready(out)

        ref = _reference(x, params, kernel_size=kernel_size,
                         padding=padding, stride=stride)
        assert out.shape == ref.shape and out.dtype == jnp.float32
        np.testing.assert_allclose(np.asarray(out), np.asarray(ref),
                                   rtol=5e-2, atol=2e-2)

    print("KERNEL_OK")
</pallas_src>

<mosaic_0001>
module attributes {stable_mosaic.version = 11 : i64} {
  func.func @_dw_bn_pw_kernel(%arg0: i32, %arg1: i32, %arg2: memref<1x2x2x9x9x64xf32, #tpu.memory_space<vmem>>, %arg3: memref<9x64xf32, #tpu.memory_space<vmem>>, %arg4: memref<1x64xf32, #tpu.memory_space<vmem>>, %arg5: memref<1x64xf32, #tpu.memory_space<vmem>>, %arg6: memref<64x128xf32, #tpu.memory_space<vmem>>, %arg7: memref<1x128xf32, #tpu.memory_space<vmem>>, %arg8: memref<1x4x8x128xf32, #tpu.memory_space<vmem>>) attributes {dimension_semantics = [#tpu.dimension_semantics<parallel>, #tpu.dimension_semantics<parallel>], iteration_bounds = array<i64: 2, 2>, scalar_prefetch = 0 : i64, scratch_operands = 0 : i64, tpu.core_type = #tpu.core_type<tc>, window_params = [{transform_indices = @transform_0, window_bounds = array<i64: 1, 2, 2, 9, 9, 64>}, {pipeline_mode = #tpu.pipeline_mode<synchronous>, transform_indices = @transform_1, window_bounds = array<i64: 9, 64>}, {pipeline_mode = #tpu.pipeline_mode<synchronous>, transform_indices = @transform_2, window_bounds = array<i64: 1, 64>}, {pipeline_mode = #tpu.pipeline_mode<synchronous>, transform_indices = @transform_3, window_bounds = array<i64: 1, 64>}, {pipeline_mode = #tpu.pipeline_mode<synchronous>, transform_indices = @transform_4, window_bounds = array<i64: 64, 128>}, {pipeline_mode = #tpu.pipeline_mode<synchronous>, transform_indices = @transform_5, window_bounds = array<i64: 1, 128>}, {transform_indices = @transform_6, window_bounds = array<i64: 1, 4, 8, 128>}]} {
    %c4_i32 = arith.constant 4 : i32
    %0 = arith.muli %arg1, %c4_i32 : i32
    %c0 = arith.constant 0 : index
    %c0_0 = arith.constant 0 : index
    %1 = vector.load %arg3[%c0, %c0_0] : memref<9x64xf32, #tpu.memory_space<vmem>>, vector<9x64xf32>
    %c0_1 = arith.constant 0 : index
    %c0_2 = arith.constant 0 : index
    %2 = vector.load %arg4[%c0_1, %c0_2] : memref<1x64xf32, #tpu.memory_space<vmem>>, vector<1x64xf32>
    %c0_3 = arith.constant 0 : index
    %c0_4 = arith.constant 0 : index
    %3 = vector.load %arg5[%c0_3, %c0_4] : memref<1x64xf32, #tpu.memory_space<vmem>>, vector<1x64xf32>
    %cst = arith.constant 0.000000e+00 : f32
    %4 = vector.broadcast %cst : f32 to vector<4x8x64xf32>
    %c0_i32 = arith.constant 0 : i32
    %5 = arith.addi %0, %c0_i32 : i32
    %c0_5 = arith.constant 0 : index
    %c0_6 = arith.constant 0 : index
    %c0_7 = arith.constant 0 : index
    %6 = arith.index_cast %5 : i32 to index
    %c0_8 = arith.constant 0 : index
    %c0_9 = arith.constant 0 : index
    %7 = vector.load %arg2[%c0_5, %c0_6, %c0_7, %6, %c0_8, %c0_9] : memref<1x2x2x9x9x64xf32, #tpu.memory_space<vmem>>, vector<1x1x1x4x8x64xf32>
    %8 = vector.shape_cast %7 : vector<1x1x1x4x8x64xf32> to vector<4x8x64xf32>
    %9 = vector.extract_strided_slice %1 {offsets = [0, 0], sizes = [1, 64], strides = [1, 1]} : vector<9x64xf32> to vector<1x64xf32>
    %10 = vector.shape_cast %9 : vector<1x64xf32> to vector<64xf32>
    %11 = vector.shape_cast %10 : vector<64xf32> to vector<1x1x64xf32>
    %12 = vector.broadcast %11 : vector<1x1x64xf32> to vector<4x8x64xf32>
    %13 = arith.mulf %8, %12 : vector<4x8x64xf32>
    %14 = arith.addf %4, %13 : vector<4x8x64xf32>
    %c0_i32_10 = arith.constant 0 : i32
    %15 = arith.addi %0, %c0_i32_10 : i32
    %c0_11 = arith.constant 0 : index
    %c0_12 = arith.constant 0 : index
    %c1 = arith.constant 1 : index
    %16 = arith.index_cast %15 : i32 to index
    %c0_13 = arith.constant 0 : index
    %c0_14 = arith.constant 0 : index
    %17 = vector.load %arg2[%c0_11, %c0_12, %c1, %16, %c0_13, %c0_14] : memref<1x2x2x9x9x64xf32, #tpu.memory_space<vmem>>, vector<1x1x1x4x8x64xf32>
    %18 = vector.shape_cast %17 : vector<1x1x1x4x8x64xf32> to vector<4x8x64xf32>
    %19 = vector.extract_strided_slice %1 {offsets = [1, 0], sizes = [1, 64], strides = [1, 1]} : vector<9x64xf32> to vector<1x64xf32>
    %20 = vector.shape_cast %19 : vector<1x64xf32> to vector<64xf32>
    %21 = vector.shape_cast %20 : vector<64xf32> to vector<1x1x64xf32>
    %22 = vector.broadcast %21 : vector<1x1x64xf32> to vector<4x8x64xf32>
    %23 = arith.mulf %18, %22 : vector<4x8x64xf32>
    %24 = arith.addf %14, %23 : vector<4x8x64xf32>
    %c0_i32_15 = arith.constant 0 : i32
    %25 = arith.addi %0, %c0_i32_15 : i32
    %c0_16 = arith.constant 0 : index
    %c0_17 = arith.constant 0 : index
    %c0_18 = arith.constant 0 : index
    %26 = arith.index_cast %25 : i32 to index
    %c1_19 = arith.constant 1 : index
    %c0_20 = arith.constant 0 : index
    %27 = vector.load %arg2[%c0_16, %c0_17, %c0_18, %26, %c1_19, %c0_20] : memref<1x2x2x9x9x64xf32, #tpu.memory_space<vmem>>, vector<1x1x1x4x8x64xf32>
    %28 = vector.shape_cast %27 : vector<1x1x1x4x8x64xf32> to vector<4x8x64xf32>
    %29 = vector.extract_strided_slice %1 {offsets = [2, 0], sizes = [1, 64], strides = [1, 1]} : vector<9x64xf32> to vector<1x64xf32>
    %30 = vector.shape_cast %29 : vector<1x64xf32> to vector<64xf32>
    %31 = vector.shape_cast %30 : vector<64xf32> to vector<1x1x64xf32>
    %32 = vector.broadcast %31 : vector<1x1x64xf32> to vector<4x8x64xf32>
    %33 = arith.mulf %28, %32 : vector<4x8x64xf32>
    %34 = arith.addf %24, %33 : vector<4x8x64xf32>
    %c0_i32_21 = arith.constant 0 : i32
    %35 = arith.addi %0, %c0_i32_21 : i32
    %c0_22 = arith.constant 0 : index
    %c1_23 = arith.constant 1 : index
    %c0_24 = arith.constant 0 : index
    %36 = arith.index_cast %35 : i32 to index
    %c0_25 = arith.constant 0 : index
    %c0_26 = arith.constant 0 : index
    %37 = vector.load %arg2[%c0_22, %c1_23, %c0_24, %36, %c0_25, %c0_26] : memref<1x2x2x9x9x64xf32, #tpu.memory_space<vmem>>, vector<1x1x1x4x8x64xf32>
    %38 = vector.shape_cast %37 : vector<1x1x1x4x8x64xf32> to vector<4x8x64xf32>
    %39 = vector.extract_strided_slice %1 {offsets = [3, 0], sizes = [1, 64], strides = [1, 1]} : vector<9x64xf32> to vector<1x64xf32>
    %40 = vector.shape_cast %39 : vector<1x64xf32> to vector<64xf32>
    %41 = vector.shape_cast %40 : vector<64xf32> to vector<1x1x64xf32>
    %42 = vector.broadcast %41 : vector<1x1x64xf32> to vector<4x8x64xf32>
    %43 = arith.mulf %38, %42 : vector<4x8x64xf32>
    %44 = arith.addf %34, %43 : vector<4x8x64xf32>
    %c0_i32_27 = arith.constant 0 : i32
    %45 = arith.addi %0, %c0_i32_27 : i32
    %c0_28 = arith.constant 0 : index
    %c1_29 = arith.constant 1 : index
    %c1_30 = arith.constant 1 : index
    %46 = arith.index_cast %45 : i32 to index
    %c0_31 = arith.constant 0 : index
    %c0_32 = arith.constant 0 : index
    %47 = vector.load %arg2[%c0_28, %c1_29, %c1_30, %46, %c0_31, %c0_32] : memref<1x2x2x9x9x64xf32, #tpu.memory_space<vmem>>, vector<1x1x1x4x8x64xf32>
    %48 = vector.shape_cast %47 : vector<1x1x1x4x8x64xf32> to vector<4x8x64xf32>
    %49 = vector.extract_strided_slice %1 {offsets = [4, 0], sizes = [1, 64], strides = [1, 1]} : vector<9x64xf32> to vector<1x64xf32>
    %50 = vector.shape_cast %49 : vector<1x64xf32> to vector<64xf32>
    %51 = vector.shape_cast %50 : vector<64xf32> to vector<1x1x64xf32>
    %52 = vector.broadcast %51 : vector<1x1x64xf32> to vector<4x8x64xf32>
    %53 = arith.mulf %48, %52 : vector<4x8x64xf32>
    %54 = arith.addf %44, %53 : vector<4x8x64xf32>
    %c0_i32_33 = arith.constant 0 : i32
    %55 = arith.addi %0, %c0_i32_33 : i32
    %c0_34 = arith.constant 0 : index
    %c1_35 = arith.constant 1 : index
    %c0_36 = arith.constant 0 : index
    %56 = arith.index_cast %55 : i32 to index
    %c1_37 = arith.constant 1 : index
    %c0_38 = arith.constant 0 : index
    %57 = vector.load %arg2[%c0_34, %c1_35, %c0_36, %56, %c1_37, %c0_38] : memref<1x2x2x9x9x64xf32, #tpu.memory_space<vmem>>, vector<1x1x1x4x8x64xf32>
    %58 = vector.shape_cast %57 : vector<1x1x1x4x8x64xf32> to vector<4x8x64xf32>
    %59 = vector.extract_strided_slice %1 {offsets = [5, 0], sizes = [1, 64], strides = [1, 1]} : vector<9x64xf32> to vector<1x64xf32>
    %60 = vector.shape_cast %59 : vector<1x64xf32> to vector<64xf32>
    %61 = vector.shape_cast %60 : vector<64xf32> to vector<1x1x64xf32>
    %62 = vector.broadcast %61 : vector<1x1x64xf32> to vector<4x8x64xf32>
    %63 = arith.mulf %58, %62 : vector<4x8x64xf32>
    %64 = arith.addf %54, %63 : vector<4x8x64xf32>
    %c1_i32 = arith.constant 1 : i32
    %65 = arith.addi %0, %c1_i32 : i32
    %c0_39 = arith.constant 0 : index
    %c0_40 = arith.constant 0 : index
    %c0_41 = arith.constant 0 : index
    %66 = arith.index_cast %65 : i32 to index
    %c0_42 = arith.constant 0 : index
    %c0_43 = arith.constant 0 : index
    %67 = vector.load %arg2[%c0_39, %c0_40, %c0_41, %66, %c0_42, %c0_43] : memref<1x2x2x9x9x64xf32, #tpu.memory_space<vmem>>, vector<1x1x1x4x8x64xf32>
    %68 = vector.shape_cast %67 : vector<1x1x1x4x8x64xf32> to vector<4x8x64xf32>
    %69 = vector.extract_strided_slice %1 {offsets = [6, 0], sizes = [1, 64], strides = [1, 1]} : vector<9x64xf32> to vector<1x64xf32>
    %70 = vector.shape_cast %69 : vector<1x64xf32> to vector<64xf32>
    %71 = vector.shape_cast %70 : vector<64xf32> to vector<1x1x64xf32>
    %72 = vector.broadcast %71 : vector<1x1x64xf32> to vector<4x8x64xf32>
    %73 = arith.mulf %68, %72 : vector<4x8x64xf32>
    %74 = arith.addf %64, %73 : vector<4x8x64xf32>
    %c1_i32_44 = arith.constant 1 : i32
    %75 = arith.addi %0, %c1_i32_44 : i32
    %c0_45 = arith.constant 0 : index
    %c0_46 = arith.constant 0 : index
    %c1_47 = arith.constant 1 : index
    %76 = arith.index_cast %75 : i32 to index
    %c0_48 = arith.constant 0 : index
    %c0_49 = arith.constant 0 : index
    %77 = vector.load %arg2[%c0_45, %c0_46, %c1_47, %76, %c0_48, %c0_49] : memref<1x2x2x9x9x64xf32, #tpu.memory_space<vmem>>, vector<1x1x1x4x8x64xf32>
    %78 = vector.shape_cast %77 : vector<1x1x1x4x8x64xf32> to vector<4x8x64xf32>
    %79 = vector.extract_strided_slice %1 {offsets = [7, 0], sizes = [1, 64], strides = [1, 1]} : vector<9x64xf32> to vector<1x64xf32>
    %80 = vector.shape_cast %79 : vector<1x64xf32> to vector<64xf32>
    %81 = vector.shape_cast %80 : vector<64xf32> to vector<1x1x64xf32>
    %82 = vector.broadcast %81 : vector<1x1x64xf32> to vector<4x8x64xf32>
    %83 = arith.mulf %78, %82 : vector<4x8x64xf32>
    %84 = arith.addf %74, %83 : vector<4x8x64xf32>
    %c1_i32_50 = arith.constant 1 : i32
    %85 = arith.addi %0, %c1_i32_50 : i32
    %c0_51 = arith.constant 0 : index
    %c0_52 = arith.constant 0 : index
    %c0_53 = arith.constant 0 : index
    %86 = arith.index_cast %85 : i32 to index
    %c1_54 = arith.constant 1 : index
    %c0_55 = arith.constant 0 : index
    %87 = vector.load %arg2[%c0_51, %c0_52, %c0_53, %86, %c1_54, %c0_55] : memref<1x2x2x9x9x64xf32, #tpu.memory_space<vmem>>, vector<1x1x1x4x8x64xf32>
    %88 = vector.shape_cast %87 : vector<1x1x1x4x8x64xf32> to vector<4x8x64xf32>
    %89 = vector.extract_strided_slice %1 {offsets = [8, 0], sizes = [1, 64], strides = [1, 1]} : vector<9x64xf32> to vector<1x64xf32>
    %90 = vector.shape_cast %89 : vector<1x64xf32> to vector<64xf32>
    %91 = vector.shape_cast %90 : vector<64xf32> to vector<1x1x64xf32>
    %92 = vector.broadcast %91 : vector<1x1x64xf32> to vector<4x8x64xf32>
    %93 = arith.mulf %88, %92 : vector<4x8x64xf32>
    %94 = arith.addf %84, %93 : vector<4x8x64xf32>
    %95 = vector.shape_cast %2 : vector<1x64xf32> to vector<1x1x64xf32>
    %96 = vector.broadcast %95 : vector<1x1x64xf32> to vector<4x8x64xf32>
    %97 = arith.mulf %94, %96 : vector<4x8x64xf32>
    %98 = vector.shape_cast %3 : vector<1x64xf32> to vector<1x1x64xf32>
    %99 = vector.broadcast %98 : vector<1x1x64xf32> to vector<4x8x64xf32>
    %100 = arith.addf %97, %99 : vector<4x8x64xf32>
    %101 = vector.shape_cast %100 : vector<4x8x64xf32> to vector<32x64xf32>
    %102 = arith.truncf %101 : vector<32x64xf32> to vector<32x64xbf16>
    %c0_56 = arith.constant 0 : index
    %c0_57 = arith.constant 0 : index
    %103 = vector.load %arg6[%c0_56, %c0_57] : memref<64x128xf32, #tpu.memory_space<vmem>>, vector<64x128xf32>
    %104 = arith.truncf %103 : vector<64x128xf32> to vector<64x128xbf16>
    %cst_58 = arith.constant dense<0.000000e+00> : vector<32x128xf32>
    %105 = tpu.matmul %102, %104, %cst_58 {dimension_numbers = #tpu.dot_dimension_numbers<[1], [0], [0], [1], [0, 0, 1, 1], [], []>} : vector<32x64xbf16>, vector<64x128xbf16>, vector<32x128xf32> -> vector<32x128xf32>
    %c0_59 = arith.constant 0 : index
    %c0_60 = arith.constant 0 : index
    %106 = vector.load %arg7[%c0_59, %c0_60] : memref<1x128xf32, #tpu.memory_space<vmem>>, vector<1x128xf32>
    %107 = vector.broadcast %106 : vector<1x128xf32> to vector<32x128xf32>
    %108 = arith.addf %105, %107 : vector<32x128xf32>
    %109 = vector.shape_cast %108 : vector<32x128xf32> to vector<1x4x8x128xf32>
    %c0_61 = arith.constant 0 : index
    %c0_62 = arith.constant 0 : index
    %c0_63 = arith.constant 0 : index
    %c0_64 = arith.constant 0 : index
    %110 = vector.load %arg8[%c0_61, %c0_62, %c0_63, %c0_64] : memref<1x4x8x128xf32, #tpu.memory_space<vmem>>, vector<1x4x8x128xf32>
    tpu.vector_store %arg8[%c0_61, %c0_62, %c0_63, %c0_64], %109 {strides = array<i32>} : memref<1x4x8x128xf32, #tpu.memory_space<vmem>>, vector<1x4x8x128xf32>,
    return
  }
  func.func @transform_0(%arg0: i32, %arg1: i32) -> (i32, i32, i32, i32, i32, i32) {
    %c0_i32 = arith.constant 0 : i32
    %c0_i32_0 = arith.constant 0 : i32
    %c0_i32_1 = arith.constant 0 : i32
    %c0_i32_2 = arith.constant 0 : i32
    %c0_i32_3 = arith.constant 0 : i32
    %c0_i32_4 = arith.constant 0 : i32
    return %arg0, %c0_i32, %c0_i32_0, %c0_i32_1, %c0_i32_2, %c0_i32_3 : i32, i32, i32, i32, i32, i32
  }
  func.func @transform_1(%arg0: i32, %arg1: i32) -> (i32, i32) {
    %c0_i32 = arith.constant 0 : i32
    %c0_i32_0 = arith.constant 0 : i32
    %c0_i32_1 = arith.constant 0 : i32
    return %c0_i32, %c0_i32_0 : i32, i32
  }
  func.func @transform_2(%arg0: i32, %arg1: i32) -> (i32, i32) {
    %c0_i32 = arith.constant 0 : i32
    %c0_i32_0 = arith.constant 0 : i32
    %c0_i32_1 = arith.constant 0 : i32
    return %c0_i32, %c0_i32_0 : i32, i32
  }
  func.func @transform_3(%arg0: i32, %arg1: i32) -> (i32, i32) {
    %c0_i32 = arith.constant 0 : i32
    %c0_i32_0 = arith.constant 0 : i32
    %c0_i32_1 = arith.constant 0 : i32
    return %c0_i32, %c0_i32_0 : i32, i32
  }
  func.func @transform_4(%arg0: i32, %arg1: i32) -> (i32, i32) {
    %c0_i32 = arith.constant 0 : i32
    %c0_i32_0 = arith.constant 0 : i32
    %c0_i32_1 = arith.constant 0 : i32
    return %c0_i32, %c0_i32_0 : i32, i32
  }
  func.func @transform_5(%arg0: i32, %arg1: i32) -> (i32, i32) {
    %c0_i32 = arith.constant 0 : i32
    %c0_i32_0 = arith.constant 0 : i32
    %c0_i32_1 = arith.constant 0 : i32
    return %c0_i32, %c0_i32_0 : i32, i32
  }
  func.func @transform_6(%arg0: i32, %arg1: i32) -> (i32, i32, i32, i32) {
    %c0_i32 = arith.constant 0 : i32
    %c0_i32_0 = arith.constant 0 : i32
    %c0_i32_1 = arith.constant 0 : i32
    return %arg0, %arg1, %c0_i32, %c0_i32_0 : i32, i32, i32, i32
  }
}

</mosaic_0001>

<llo_original>
// kernel: depthwise_conv2d_forward.1
$region0: #{depthwise_conv2d_forward.1}
  #allocation0 [shape = 'u32[]', space=smem, size = 0x4, offset = 0x4, fixed_abs, tag = 'smem constant byte address 0x4 - core index']
  #allocation1 [shape = 'u32[72,128]{1,0:T(1,128)}', space=vmem, size = 0x9000, scoped, tag = 'internal scratch']
  %s0 = inlined_call_operand.vmem [shape: f32[2,2,2,9,9,64], index: 0, kind: input, shape index: {}]
  %s1 = inlined_call_operand.vmem [shape: f32[9,64], index: 1, kind: input, shape index: {}]
  %s2 = inlined_call_operand.vmem [shape: f32[1,64], index: 2, kind: input, shape index: {}]
  %s3 = inlined_call_operand.vmem [shape: f32[1,64], index: 3, kind: input, shape index: {}]
  %s4 = inlined_call_operand.vmem [shape: f32[64,128], index: 4, kind: input, shape index: {}]
  %s5 = inlined_call_operand.vmem [shape: f32[1,128], index: 5, kind: input, shape index: {}]
  %s6 = inlined_call_operand.hbm [shape: f32[2,8,8,128], index: 6, kind: output, shape index: {}]
  %s7 = sld [smem:[#allocation0]]
  $region57: #{depthwise_conv2d_forward.1} parent=0
    _
  %s9 = ssub.s32 1, %s7
  %s10 = scalar_select 0, %s9, %s7
  $region1: #{depthwise_conv2d_forward.1} parent=0
    #allocation2 [shape = 'u8[32768]{0}', space=vmem, size = 0x8000, scoped, tag = 'output window, operand 0']
    #allocation3 [shape = 's32[2]{0}', space=sflag, size = 0x8, scoped, tag = 'scoped memory for depthwise_conv2d_forward.1']
    %11 = vsyncpa [#allocation3], 0
    %s12 = scalar_lea.sflag [#allocation3], 1
    %13 = vsyncpa %s12, 0
    loop: start=0, step=1, limit=6
    $region2: #{depthwise_conv2d_forward.1} parent=1 // loop_pre_header
      _
    $region3: #{depthwise_conv2d_forward.1} parent=1 // loop_header
      %s15 = sphi 0, %s19
      %p16 = scmp.ge.s32.totalorder %s15, 6
      %s22 = sphi 0, %s34
      %s23 = sphi 0, %s30
      %s24 = sphi 0, %s22
      %s25 = sphi 0, %s23
      %s26 = sphi 0, %s24
      %s27 = sphi 0, %s25
      %s37 = sphi 0, %s39
      %s40 = sphi 0, %s37
      %s41 = sphi 0, %s40
      %s57 = sphi 0, %s41
      %s61 = sphi 0, %s61
      %s63 = sphi 0, %s61
      %s64 = sphi 0, %s63
      %s78 = sphi 0, %s64
      %s82 = sphi 0, %s82
      %s84 = sphi 0, %s82
      %s85 = sphi 0, %s84
      %s99 = sphi 0, %s85
      %s103 = sphi 0, %s103
      %s105 = sphi 0, %s103
      %s106 = sphi 0, %s105
      %s120 = sphi 0, %s106
      %s124 = sphi 0, %s124
      %s126 = sphi 0, %s124
      %s127 = sphi 0, %s126
      %s141 = sphi 0, %s127
      %s145 = sphi 0, %s145
      %s147 = sphi 0, %s145
      %s148 = sphi 0, %s147
      %s162 = sphi 0, %s148
      %s170 = sphi 0, %s172
      %s173 = sphi 0, %s170
      %s174 = sphi 0, %s173
      %s190 = sphi 0, %s174
    $region4: #{depthwise_conv2d_forward.1} parent=1 // loop_header_branch
      %18 = sbr.rel (%p16) target = $region8
    $region5: #{depthwise_conv2d_forward.1} parent=1 // loop_body
      %s20 = ssub.s32 %s15, 1
      %s21 = ssub.s32 %s15, 2
      %s28 = sadd.s32 1, %s23
      %p29 = scmp.ge.s32.totalorder %s28, 2
      %s30 = scalar_select %p29, 0, %s28
      %s31 = sadd.s32 1, %s22
      %s32 = scalar_select %p29, %s31, %s22
      %p33 = scmp.ge.s32.totalorder %s32, 2
      %s34 = scalar_select %p33, 0, %s32
      %s35 = ssub.s32 %s22, %s34
      %p36 = scmp.eq.s32.totalorder %s35, 0
      %s38 = sadd.s32 %s37, 1
      %s39 = scalar_select %p36, %s37, %s38
      %p42 = pneg %p36
      %p43 = scmp.eq.s32.totalorder %s15, 3
      %p44 = por %p42, %p43
      %p45 = scmp.ne.s32.totalorder %s37, %s40
      %p46 = scmp.eq.s32.totalorder %s15, 0
      %p47 = por %p45, %p46
      %p48 = scmp.ne.s32.totalorder %s37, %s40
      %p49 = scmp.eq.s32.totalorder %s20, 3
      %p50 = por %p48, %p49
      %p51 = scmp.ne.s32.totalorder %s40, %s41
      %p52 = scmp.eq.s32.totalorder %s20, 0
      %p53 = por %p51, %p52
      %p54 = scmp.ne.s32.totalorder %s40, %s41
      %p55 = scmp.eq.s32.totalorder %s21, 3
      %p56 = por %p54, %p55
      %p58 = scmp.ne.s32.totalorder %s41, %s57
      %p59 = scmp.eq.s32.totalorder %s21, 0
      %p60 = por %p58, %p59
      %s62 = sadd.s32 %s61, 1
      %p65 = scmp.eq.s32.totalorder %s15, 3
      %p66 = scmp.ne.s32.totalorder %s61, %s63
      %p67 = scmp.eq.s32.totalorder %s15, 0
      %p68 = por %p66, %p67
      %p69 = scmp.ne.s32.totalorder %s61, %s63
      %p70 = scmp.eq.s32.totalorder %s20, 3
      %p71 = por %p69, %p70
      %p72 = scmp.ne.s32.totalorder %s63, %s64
      %p73 = scmp.eq.s32.totalorder %s20, 0
      %p74 = por %p72, %p73
      %p75 = scmp.ne.s32.totalorder %s63, %s64
      %p76 = scmp.eq.s32.totalorder %s21, 3
      %p77 = por %p75, %p76
      %p79 = scmp.ne.s32.totalorder %s64, %s78
      %p80 = scmp.eq.s32.totalorder %s21, 0
      %p81 = por %p79, %p80
      %s83 = sadd.s32 %s82, 1
      %p86 = scmp.eq.s32.totalorder %s15, 3
      %p87 = scmp.ne.s32.totalorder %s82, %s84
      %p88 = scmp.eq.s32.totalorder %s15, 0
      %p89 = por %p87, %p88
      %p90 = scmp.ne.s32.totalorder %s82, %s84
      %p91 = scmp.eq.s32.totalorder %s20, 3
      %p92 = por %p90, %p91
      %p93 = scmp.ne.s32.totalorder %s84, %s85
      %p94 = scmp.eq.s32.totalorder %s20, 0
      %p95 = por %p93, %p94
      %p96 = scmp.ne.s32.totalorder %s84, %s85
      %p97 = scmp.eq.s32.totalorder %s21, 3
      %p98 = por %p96, %p97
      %p100 = scmp.ne.s32.totalorder %s85, %s99
      %p101 = scmp.eq.s32.totalorder %s21, 0
      %p102 = por %p100, %p101
      %s104 = sadd.s32 %s103, 1
      %p107 = scmp.eq.s32.totalorder %s15, 3
      %p108 = scmp.ne.s32.totalorder %s103, %s105
      %p109 = scmp.eq.s32.totalorder %s15, 0
      %p110 = por %p108, %p109
      %p111 = scmp.ne.s32.totalorder %s103, %s105
      %p112 = scmp.eq.s32.totalorder %s20, 3
      %p113 = por %p111, %p112
      %p114 = scmp.ne.s32.totalorder %s105, %s106
      %p115 = scmp.eq.s32.totalorder %s20, 0
      %p116 = por %p114, %p115
      %p117 = scmp.ne.s32.totalorder %s105, %s106
      %p118 = scmp.eq.s32.totalorder %s21, 3
      %p119 = por %p117, %p118
      %p121 = scmp.ne.s32.totalorder %s106, %s120
      %p122 = scmp.eq.s32.totalorder %s21, 0
      %p123 = por %p121, %p122
      %s125 = sadd.s32 %s124, 1
      %p128 = scmp.eq.s32.totalorder %s15, 3
      %p129 = scmp.ne.s32.totalorder %s124, %s126
      %p130 = scmp.eq.s32.totalorder %s15, 0
      %p131 = por %p129, %p130
      %p132 = scmp.ne.s32.totalorder %s124, %s126
      %p133 = scmp.eq.s32.totalorder %s20, 3
      %p134 = por %p132, %p133
      %p135 = scmp.ne.s32.totalorder %s126, %s127
      %p136 = scmp.eq.s32.totalorder %s20, 0
      %p137 = por %p135, %p136
      %p138 = scmp.ne.s32.totalorder %s126, %s127
      %p139 = scmp.eq.s32.totalorder %s21, 3
      %p140 = por %p138, %p139
      %p142 = scmp.ne.s32.totalorder %s127, %s141
      %p143 = scmp.eq.s32.totalorder %s21, 0
      %p144 = por %p142, %p143
      %s146 = sadd.s32 %s145, 1
      %p149 = scmp.eq.s32.totalorder %s15, 3
      %p150 = scmp.ne.s32.totalorder %s145, %s147
      %p151 = scmp.eq.s32.totalorder %s15, 0
      %p152 = por %p150, %p151
      %p153 = scmp.ne.s32.totalorder %s145, %s147
      %p154 = scmp.eq.s32.totalorder %s20, 3
      %p155 = por %p153, %p154
      %p156 = scmp.ne.s32.totalorder %s147, %s148
      %p157 = scmp.eq.s32.totalorder %s20, 0
      %p158 = por %p156, %p157
      %p159 = scmp.ne.s32.totalorder %s147, %s148
      %p160 = scmp.eq.s32.totalorder %s21, 3
      %p161 = por %p159, %p160
      %p163 = scmp.ne.s32.totalorder %s148, %s162
      %p164 = scmp.eq.s32.totalorder %s21, 0
      %p165 = por %p163, %p164
      %s166 = ssub.s32 %s22, %s34
      %s167 = ssub.s32 %s23, %s30
      %s168 = sor.u32 %s166, %s167
      %p169 = scmp.eq.s32.totalorder %s168, 0
      %s171 = sadd.s32 %s170, 1
      %s172 = scalar_select %p169, %s170, %s171
      %p175 = pneg %p169
      %p176 = scmp.eq.s32.totalorder %s15, 3
      %p177 = por %p175, %p176
      %p178 = scmp.ne.s32.totalorder %s170, %s173
      %p179 = scmp.eq.s32.totalorder %s15, 0
      %p180 = por %p178, %p179
      %p181 = scmp.ne.s32.totalorder %s170, %s173
      %p182 = scmp.eq.s32.totalorder %s20, 3
      %p183 = por %p181, %p182
      %p184 = scmp.ne.s32.totalorder %s173, %s174
      %p185 = scmp.eq.s32.totalorder %s20, 0
      %p186 = por %p184, %p185
      %p187 = scmp.ne.s32.totalorder %s173, %s174
      %p188 = scmp.eq.s32.totalorder %s21, 3
      %p189 = por %p187, %p188
      %p191 = scmp.ne.s32.totalorder %s174, %s190
      %p192 = scmp.eq.s32.totalorder %s21, 0
      %p193 = por %p191, %p192
      %p194 = scmp.le.s32.totalorder 1, %s15
      %p195 = scmp.lt.s32.totalorder %s15, 5
      %p196 = pnand %p194, %p195
      %p197 = pneg %p196
      // Predicated region
      $region9: #{depthwise_conv2d_forward.1} parent=5 // pred_check
        _
      $region10: #{depthwise_conv2d_forward.1} parent=5 // pred_check_branch
        %199 = sbr.rel (%p196) target = $region12
      $region11: #{depthwise_conv2d_forward.1} parent=5 // pred_region
        %s200 = ssub.s32 %s15, 1
        // Predicated region
        $region13: #{depthwise_conv2d_forward.1} parent=11 // pred_check
          %p201 = pneg %p74
        $region14: #{depthwise_conv2d_forward.1} parent=11 // pred_check_branch
          %203 = sbr.rel (%p201) target = $region16
        $region15: #{depthwise_conv2d_forward.1} parent=11 // pred_region
          _
        $region16: #{depthwise_conv2d_forward.1} parent=11 // pred_fallthru
          _
        // Predicated region
        $region17: #{depthwise_conv2d_forward.1} parent=11 // pred_check
          %p204 = pneg %p95
        $region18: #{depthwise_conv2d_forward.1} parent=11 // pred_check_branch
          %206 = sbr.rel (%p204) target = $region20
        $region19: #{depthwise_conv2d_forward.1} parent=11 // pred_region
          _
        $region20: #{depthwise_conv2d_forward.1} parent=11 // pred_fallthru
          _
        // Predicated region
        $region21: #{depthwise_conv2d_forward.1} parent=11 // pred_check
          %p207 = pneg %p116
        $region22: #{depthwise_conv2d_forward.1} parent=11 // pred_check_branch
          %209 = sbr.rel (%p207) target = $region24
        $region23: #{depthwise_conv2d_forward.1} parent=11 // pred_region
          _
        $region24: #{depthwise_conv2d_forward.1} parent=11 // pred_fallthru
          _
        // Predicated region
        $region25: #{depthwise_conv2d_forward.1} parent=11 // pred_check
          %p210 = pneg %p137
        $region26: #{depthwise_conv2d_forward.1} parent=11 // pred_check_branch
          %212 = sbr.rel (%p210) target = $region28
        $region27: #{depthwise_conv2d_forward.1} parent=11 // pred_region
          _
        $region28: #{depthwise_conv2d_forward.1} parent=11 // pred_fallthru
          _
        // Predicated region
        $region29: #{depthwise_conv2d_forward.1} parent=11 // pred_check
          %p213 = pneg %p158
        $region30: #{depthwise_conv2d_forward.1} parent=11 // pred_check_branch
          %215 = sbr.rel (%p213) target = $region32
        $region31: #{depthwise_conv2d_forward.1} parent=11 // pred_region
          _
        $region32: #{depthwise_conv2d_forward.1} parent=11 // pred_fallthru
          _
      $region12: #{depthwise_conv2d_forward.1} parent=5 // pred_fallthru
        _
      %p216 = scmp.lt.s32.totalorder %s15, 4
      // Predicated region
      $region33: #{depthwise_conv2d_forward.1} parent=5 // pred_check
        %p217 = pneg %p216
      $region34: #{depthwise_conv2d_forward.1} parent=5 // pred_check_branch
        %219 = sbr.rel (%p217) target = $region36
      $region35: #{depthwise_conv2d_forward.1} parent=5 // pred_region
        // Predicated region
        $region37: #{depthwise_conv2d_forward.1} parent=35 // pred_check
          %p220 = pneg %p47
        $region38: #{depthwise_conv2d_forward.1} parent=35 // pred_check_branch
          %222 = sbr.rel (%p220) target = $region40
        $region39: #{depthwise_conv2d_forward.1} parent=35 // pred_region
          %p223 = scmp.lt.s32.totalorder %s22, 1
          %s224 = scalar_select %p223, %s22, 1
          %s225 = smul.addr %s224, 72
          %s226 = smul.addr %s225, 8
          %s227 = scalar_lea.vmem %s0, %s226
        $region40: #{depthwise_conv2d_forward.1} parent=35 // pred_fallthru
          _
      $region36: #{depthwise_conv2d_forward.1} parent=5 // pred_fallthru
        _
      %p228 = scmp.le.s32.totalorder 1, %s15
      %p229 = scmp.lt.s32.totalorder %s15, 5
      %p230 = pnand %p228, %p229
      %p231 = pneg %p230
      // Predicated region
      $region41: #{depthwise_conv2d_forward.1} parent=5 // pred_check
        _
      $region42: #{depthwise_conv2d_forward.1} parent=5 // pred_check_branch
        %233 = sbr.rel (%p230) target = $region44
      $region43: #{depthwise_conv2d_forward.1} parent=5 // pred_region
        %s234 = ssub.s32 %s15, 1
        %p235 = scmp.lt.s32.totalorder %s24, 1
        %s236 = scalar_select %p235, %s24, 1
        %s237 = smul.addr %s236, 72
        %s238 = smul.addr %s237, 8
        %s239 = scalar_lea.vmem %s0, %s238
        %p240 = pneg %p53
        %p241 = pneg %p50
        %p242 = pneg %p74
        %p243 = pneg %p71
        %p244 = pneg %p95
        %p245 = pneg %p92
        %p246 = pneg %p116
        %p247 = pneg %p113
        %p248 = pneg %p137
        %p249 = pneg %p134
        %p250 = pneg %p158
        %p251 = pneg %p155
        %p252 = pneg %p186
        %p253 = pneg %p183
        %s254 = sand.u32 %s173, 1
        %s255 = scalar_lea.sflag [#allocation3], %s254
        %s256 = sand.u32 %s173, 1
        %s257 = smul.addr %s256, 32
        %s258 = scalar_lea.vmem [#allocation2], %s257
        %p259 = scmp.lt.s32.totalorder %s24, 1
        %s260 = scalar_select %p259, %s24, 1
        %s261 = smul.addr %s260, 72
        %s262 = smul.addr %s261, 8
        %s263 = scalar_lea.vmem %s0, %s262
        %s264 = smul.u32 4, %s25
        %s266 = smul.u32 %s25, 4
        %v267 = vld [vmem:[%s1] sm:$0xff]
        %v268 = vld [vmem:[%s1 + $0x8] sm:$0x1]
        %v269 = vld [vmem:[%s2] sm:$0x1]
        %v270 = vld [vmem:[%s3] sm:$0x1]
        %s271 = smul.u32 %s266, 16
        %s272 = scalar_lea.vmem %s263, %s271
        %v273 = vld [vmem:[%s272] sm:$0xff]
        %v274 = vld [vmem:[%s272 + $0x10] sm:$0xff]
        %v275 = vld [vmem:[%s272 + $0x20] sm:$0xff]
        %v276 = vld [vmem:[%s272 + $0x30] sm:$0xff]
        %v277 = vperm.slane %v267, 0
        %v278 = vmul.f32 %v273, %v277
        %v279 = vmul.f32 %v274, %v277
        %v280 = vmul.f32 %v275, %v277
        %v281 = vmul.f32 %v276, %v277
        %v282 = vadd.f32 %v278, 0.0
        %v283 = vadd.f32 %v279, 0.0
        %v284 = vadd.f32 %v280, 0.0
        %v285 = vadd.f32 %v281, 0.0
        %s286 = sadd.s32 %s271, 144
        %s287 = scalar_lea.vmem %s263, %s286
        %v288 = vld [vmem:[%s287] sm:$0xff]
        %v289 = vld [vmem:[%s287 + $0x10] sm:$0xff]
        %v290 = vld [vmem:[%s287 + $0x20] sm:$0xff]
        %v291 = vld [vmem:[%s287 + $0x30] sm:$0xff]
        %v292 = vperm.slane %v267, 1
        %v293 = vmul.f32 %v288, %v292
        %v294 = vmul.f32 %v289, %v292
        %v295 = vmul.f32 %v290, %v292
        %v296 = vmul.f32 %v291, %v292
        %v297 = vadd.f32 %v282, %v293
        %v298 = vadd.f32 %v283, %v294
        %v299 = vadd.f32 %v284, %v295
        %v300 = vadd.f32 %v285, %v296
        %v301 = vld [vmem:[%s272 + $0x1] sm:$0xff]
        %v302 = vld [vmem:[%s272 + $0x11] sm:$0xff]
        %v303 = vld [vmem:[%s272 + $0x21] sm:$0xff]
        %v304 = vld [vmem:[%s272 + $0x31] sm:$0xff]
        %v305 = vperm.slane %v267, 2
        %v306 = vmul.f32 %v301, %v305
        %v307 = vmul.f32 %v302, %v305
        %v308 = vmul.f32 %v303, %v305
        %v309 = vmul.f32 %v304, %v305
        %v310 = vadd.f32 %v297, %v306
        %v311 = vadd.f32 %v298, %v307
        %v312 = vadd.f32 %v299, %v308
        %v313 = vadd.f32 %v300, %v309
        %s314 = sadd.s32 %s271, 288
        %s315 = scalar_lea.vmem %s263, %s314
        %v316 = vld [vmem:[%s315] sm:$0xff]
        %v317 = vld [vmem:[%s315 + $0x10] sm:$0xff]
        %v318 = vld [vmem:[%s315 + $0x20] sm:$0xff]
        %v319 = vld [vmem:[%s315 + $0x30] sm:$0xff]
        %v320 = vperm.slane %v267, 3
        %v321 = vmul.f32 %v316, %v320
        %v322 = vmul.f32 %v317, %v320
        %v323 = vmul.f32 %v318, %v320
        %v324 = vmul.f32 %v319, %v320
        %v325 = vadd.f32 %v310, %v321
        %v326 = vadd.f32 %v311, %v322
        %v327 = vadd.f32 %v312, %v323
        %v328 = vadd.f32 %v313, %v324
        %s329 = sadd.s32 %s286, 288
        %s330 = scalar_lea.vmem %s263, %s329
        %v331 = vld [vmem:[%s330] sm:$0xff]
        %v332 = vld [vmem:[%s330 + $0x10] sm:$0xff]
        %v333 = vld [vmem:[%s330 + $0x20] sm:$0xff]
        %v334 = vld [vmem:[%s330 + $0x30] sm:$0xff]
        %v335 = vperm.slane %v267, 4
        %v336 = vmul.f32 %v331, %v335
        %v337 = vmul.f32 %v332, %v335
        %v338 = vmul.f32 %v333, %v335
        %v339 = vmul.f32 %v334, %v335
        %v340 = vadd.f32 %v325, %v336
        %v341 = vadd.f32 %v326, %v337
        %v342 = vadd.f32 %v327, %v338
        %v343 = vadd.f32 %v328, %v339
        %v344 = vld [vmem:[%s315 + $0x1] sm:$0xff]
        %v345 = vld [vmem:[%s315 + $0x11] sm:$0xff]
        %v346 = vld [vmem:[%s315 + $0x21] sm:$0xff]
        %v347 = vld [vmem:[%s315 + $0x31] sm:$0xff]
        %v348 = vperm.slane %v267, 5
        %v349 = vmul.f32 %v344, %v348
        %v350 = vmul.f32 %v345, %v348
        %v351 = vmul.f32 %v346, %v348
        %v352 = vmul.f32 %v347, %v348
        %v353 = vadd.f32 %v340, %v349
        %v354 = vadd.f32 %v341, %v350
        %v355 = vadd.f32 %v342, %v351
        %v356 = vadd.f32 %v343, %v352
        %s357 = sadd.s32 %s266, 1
        %s358 = smul.u32 %s357, 16
        %s359 = scalar_lea.vmem %s263, %s358
        %v360 = vld [vmem:[%s359] sm:$0xff]
        %v361 = vld [vmem:[%s359 + $0x10] sm:$0xff]
        %v362 = vld [vmem:[%s359 + $0x20] sm:$0xff]
        %v363 = vld [vmem:[%s359 + $0x30] sm:$0xff]
        %v364 = vperm.slane %v267, 6
        %v365 = vmul.f32 %v360, %v364
        %v366 = vmul.f32 %v361, %v364
        %v367 = vmul.f32 %v362, %v364
        %v368 = vmul.f32 %v363, %v364
        %v369 = vadd.f32 %v353, %v365
        %v370 = vadd.f32 %v354, %v366
        %v371 = vadd.f32 %v355, %v367
        %v372 = vadd.f32 %v356, %v368
        %s373 = sadd.s32 %s358, 144
        %s374 = scalar_lea.vmem %s263, %s373
        %v375 = vld [vmem:[%s374] sm:$0xff]
        %v376 = vld [vmem:[%s374 + $0x10] sm:$0xff]
        %v377 = vld [vmem:[%s374 + $0x20] sm:$0xff]
        %v378 = vld [vmem:[%s374 + $0x30] sm:$0xff]
        %v379 = vperm.slane %v267, 7
        %v380 = vmul.f32 %v375, %v379
        %v381 = vmul.f32 %v376, %v379
        %v382 = vmul.f32 %v377, %v379
        %v383 = vmul.f32 %v378, %v379
        %v384 = vadd.f32 %v369, %v380
        %v385 = vadd.f32 %v370, %v381
        %v386 = vadd.f32 %v371, %v382
        %v387 = vadd.f32 %v372, %v383
        %v388 = vld [vmem:[%s359 + $0x1] sm:$0xff]
        %v389 = vld [vmem:[%s359 + $0x11] sm:$0xff]
        %v390 = vld [vmem:[%s359 + $0x21] sm:$0xff]
        %v391 = vld [vmem:[%s359 + $0x31] sm:$0xff]
        %v392 = vperm.slane %v268, 0
        %v393 = vmul.f32 %v388, %v392
        %v394 = vmul.f32 %v389, %v392
        %v395 = vmul.f32 %v390, %v392
        %v396 = vmul.f32 %v391, %v392
        %v397 = vadd.f32 %v384, %v393
        %v398 = vadd.f32 %v385, %v394
        %v399 = vadd.f32 %v386, %v395
        %v400 = vadd.f32 %v387, %v396
        %v402 = vperm.slane %v269, 0
        %v404 = vmul.f32 %v397, %v402
        %v405 = vmul.f32 %v398, %v402
        %v406 = vmul.f32 %v399, %v402
        %v407 = vmul.f32 %v400, %v402
        %v409 = vperm.slane %v270, 0
        %v411 = vadd.f32 %v404, %v409
        %v412 = vadd.f32 %v405, %v409
        %v413 = vadd.f32 %v406, %v409
        %v414 = vadd.f32 %v407, %v409
        %v415 = vpack.c.bf16 %v412, %v411
        %v416 = vpack.c.bf16 %v414, %v413
        %v417 = vld [vmem:[%s4] sm:$0xff]
        %v418 = vld [vmem:[%s4 + $0x8] sm:$0xff]
        %v419 = vld [vmem:[%s4 + $0x10] sm:$0xff]
        %v420 = vld [vmem:[%s4 + $0x18] sm:$0xff]
        %v421 = vld [vmem:[%s4 + $0x20] sm:$0xff]
        %v422 = vld [vmem:[%s4 + $0x28] sm:$0xff]
        %v423 = vld [vmem:[%s4 + $0x30] sm:$0xff]
        %v424 = vld [vmem:[%s4 + $0x38] sm:$0xff]
        %v425 = vpack.c.bf16 %v418, %v417
        %v426 = vpack.c.bf16 %v420, %v419
        %v427 = vpack.c.bf16 %v422, %v421
        %v428 = vpack.c.bf16 %v424, %v423
        %v429 = vld [vmem:[%s5] sm:$0x1]
        %v431 = vperm.slane %v429, 0
        %vm433 = vcmask 523264
        %v435 = vsel %vm433, %v415, 0
        %v438 = vsel %vm433, %v416, 0
        %440 = vmatpush.bf16.msra.mxu0 0
        %441 = vmatpush.bf16.msra.mxu0 0
        %442 = vmatpush.bf16.msra.mxu0 0
        %443 = vmatpush.bf16.msra.mxu0 0
        %444 = vmatpush.bf16.msra.mxu0 %v428
        %445 = vmatpush.bf16.msra.mxu0 %v427
        %446 = vmatpush.bf16.msra.mxu0 %v426
        %447 = vmatpush.bf16.msra.mxu0 %v425
        %448 = vmatmul.bf16.gmra.mxu0 %v435
        %v449 = vpop.f32.mrf.mxu0
        %v450 = vadd.f32 %v431, %v449
        %v451 = vpop.f32.mrf.mxu0
        %v452 = vadd.f32 %v431, %v451
        %453 = vmatmul.bf16.gmra.mxu0 %v438
        %v454 = vpop.f32.mrf.mxu0
        %v455 = vadd.f32 %v431, %v454
        %v456 = vpop.f32.mrf.mxu0
        %v457 = vadd.f32 %v431, %v456
        %458 = vdwg.mxu0
        %459 = vst [vmem:[%s258] sm:$0xff] %v450
        %460 = vst [vmem:[%s258 + $0x8] sm:$0xff] %v452
        %461 = vst [vmem:[%s258 + $0x10] sm:$0xff] %v455
        %462 = vst [vmem:[%s258 + $0x18] sm:$0xff] %v457
        %s463 = sand.u32 %s173, 1
        %s464 = scalar_lea.sflag [#allocation3], %s463
        %s465 = sand.u32 %s173, 1
        %s466 = smul.addr %s465, 32
        %s467 = scalar_lea.vmem [#allocation2], %s466
        // Predicated region
        $region45: #{depthwise_conv2d_forward.1} parent=43 // pred_check
          %p468 = pneg %p183
        $region46: #{depthwise_conv2d_forward.1} parent=43 // pred_check_branch
          %470 = sbr.rel (%p468) target = $region48
        $region47: #{depthwise_conv2d_forward.1} parent=43 // pred_region
          %s471 = smul.u32 4, %s25
          %473 = vsyncadd %s464, 0
          %s474 = smul.addr %s24, 8
          %s475 = sadd.s32 %s471, %s474
          %s476 = smul.addr %s475, 8
          %s477 = scalar_lea.hbm %s6, %s476
          %s478 = sshll.u32 %s467, 4
          %s479 = int_to_ptr.vmem [resolvable:$true] %s478
          %s480 = sshll.u32 %s477, 4
          %s481 = int_to_ptr.hbm [resolvable:$true] %s480
          %486 = dma.vmem_to_hbm [thread:$0]  %s479, 512, %s481, %s464, 128, 128, 8
        $region48: #{depthwise_conv2d_forward.1} parent=43 // pred_fallthru
          _
      $region44: #{depthwise_conv2d_forward.1} parent=5 // pred_fallthru
        _
      %p487 = scmp.le.s32.totalorder 2, %s15
      // Predicated region
      $region49: #{depthwise_conv2d_forward.1} parent=5 // pred_check
        %p488 = pneg %p487
      $region50: #{depthwise_conv2d_forward.1} parent=5 // pred_check_branch
        %490 = sbr.rel (%p488) target = $region52
      $region51: #{depthwise_conv2d_forward.1} parent=5 // pred_region
        %s491 = ssub.s32 %s15, 2
        // Predicated region
        $region53: #{depthwise_conv2d_forward.1} parent=51 // pred_check
          %p492 = pneg %p189
        $region54: #{depthwise_conv2d_forward.1} parent=51 // pred_check_branch
          %494 = sbr.rel (%p492) target = $region56
        $region55: #{depthwise_conv2d_forward.1} parent=51 // pred_region
          %s495 = sand.u32 %s174, 1
          %s496 = scalar_lea.sflag [#allocation3], %s495
          %s497 = sand.u32 %s174, 1
          %s498 = smul.addr %s497, 32
          %s499 = scalar_lea.vmem [#allocation2], %s498
          %501 = dma.done %s496, 512
        $region56: #{depthwise_conv2d_forward.1} parent=51 // pred_fallthru
          _
      $region52: #{depthwise_conv2d_forward.1} parent=5 // pred_fallthru
        _
    $region6: #{depthwise_conv2d_forward.1} parent=1 // loop_footer
      %s19 = sadd.s32 1, %s15
    $region7: #{depthwise_conv2d_forward.1} parent=1 // loop_footer_branch
      %14 = sbr.rel target = $region3
    $region8: #{depthwise_conv2d_forward.1} parent=1 // loop_exit
      _
    %502 = vsyncpa [#allocation3], 1
    %s503 = scalar_lea.sflag [#allocation3], 1
    %504 = vsyncpa %s503, 1

</llo_original>
